<compile_context>
chip_gen: v7x
topology: tpu7x:2x2x1
jax: 0.10.0
libtpu: 0.0.40
codegen_flags: <defaults>
</compile_context>

<pallas_src>
import jax
import jax.numpy as jnp
from jax.experimental import pallas as pl
from jax.experimental.pallas import tpu as pltpu


# ----------------------------- kernels -------------------------------------


def _mm_kernel_direct(a_ref, b_ref, o_ref):
    """Single contraction step: write the tile directly (no init/epilogue)."""
    o_ref[...] = jnp.dot(
        a_ref[...], b_ref[...], preferred_element_type=jnp.float32
    ).astype(o_ref.dtype)


def _mm_kernel_accum_out(a_ref, b_ref, o_ref):
    """Multi-step reduction, f32 output: accumulate directly into o_ref.

    Correct only because the reduction axis is the last grid axis and the
    output index_map is constant over it (output block stays resident).
    """
    @pl.when(pl.program_id(2) == 0)
    def _():
        o_ref[...] = jnp.zeros_like(o_ref)

    o_ref[...] += jnp.dot(
        a_ref[...], b_ref[...], preferred_element_type=jnp.float32
    )


def _mm_kernel_accum_scratch(a_ref, b_ref, o_ref, acc_ref):
    """Multi-step reduction, non-f32 output: f32 scratch accumulator."""
    @pl.when(pl.program_id(2) == 0)
    def _():
        acc_ref[...] = jnp.zeros_like(acc_ref)

    acc_ref[...] += jnp.dot(
        a_ref[...], b_ref[...], preferred_element_type=jnp.float32
    )

    @pl.when(pl.program_id(2) == pl.num_programs(2) - 1)
    def _():
        o_ref[...] = acc_ref[...].astype(o_ref.dtype)


# ----------------------------- tiling helpers -------------------------------


def _sublane_align(dtype) -> int:
    """Second-to-last block-dim alignment by element width (f32:8, bf16:16, i8:32)."""
    return {4: 8, 2: 16, 1: 32}.get(jnp.dtype(dtype).itemsize, 8)


def _pick_tile(dim: int, cap: int, aligns) -> tuple[int, int]:
    """Pick a tile for one dimension.

    Returns (tile, padded_dim).  Preference order:
      1. full dim if it fits the cap (always a legal block),
      2. largest aligned divisor of dim under the cap (aligns tried in order,
         e.g. 256 first for MXU friendliness, then 128),
      3. otherwise pad the dim up to a multiple of the largest aligned tile
         under the cap (never returns an oversized full-dim block).
    """
    if dim <= cap:
        return dim, dim
    for align in aligns:
        t = (cap // align) * align
        while t >= align:
            if dim % t == 0:
                return t, dim
            t -= align
    align = aligns[-1]
    t = max((cap // align) * align, align)
    padded = -(-dim // t) * t
    return t, padded


_VMEM_TILE_BUDGET = 40 << 20  # conservative: fits v7x (64 MiB) with headroom


# ----------------------------- wrapper --------------------------------------


def pallas_matmul(a: jax.Array, b: jax.Array,
                  *, tm_cap: int = 512, tn_cap: int = 2048, tk_cap: int = 1024
                  ) -> jax.Array:
    """C = A @ B via a Pallas TPU kernel. A: (M, K), B: (K, N)."""
    M, K = a.shape
    K2, N = b.shape
    assert K == K2, f"inner dims mismatch: {K} vs {K2}"
    out_dtype = jnp.promote_types(a.dtype, b.dtype)

    a_bytes = jnp.dtype(a.dtype).itemsize
    b_bytes = jnp.dtype(b.dtype).itemsize
    o_bytes = jnp.dtype(out_dtype).itemsize
    sub_a = max(_sublane_align(a.dtype), _sublane_align(out_dtype))
    lane_aligns = (256, 128)  # prefer 256 (v6e/v7x MXU), fall back to 128

    # --- tile selection under a VMEM budget (double-buffered in/out + scratch)
    tm = tn = tk = 0
    Mp = Np = Kp = 0
    footprint = 0
    for _ in range(16):
        tm, Mp = _pick_tile(M, tm_cap, (sub_a,))
        tk, Kp = _pick_tile(K, tk_cap, lane_aligns)
        tn, Np = _pick_tile(N, tn_cap, lane_aligns)
        needs_scratch = (Kp // tk > 1) and (out_dtype != jnp.float32)
        footprint = (2 * (tm * tk * a_bytes + tk * tn * b_bytes)
                     + 2 * tm * tn * o_bytes
                     + (tm * tn * 4 if needs_scratch else 0))
        if footprint <= _VMEM_TILE_BUDGET:
            break
        # Shrink the cap behind the largest tile and retry.
        if tn >= max(tm, tk):
            tn_cap = max(tn // 2, 128)
        elif tk >= tm:
            tk_cap = max(tk // 2, 128)
        else:
            tm_cap = max(tm // 2, sub_a)

    # --- v7x megacore: keep >=2 blocks on a "parallel" axis when possible.
    if Mp // tm == 1 and Np // tn == 1:
        if tn % 256 == 0:            # tn//2 stays a multiple of 128
            tn //= 2
        elif tm % (2 * sub_a) == 0:  # tm//2 stays sublane-aligned
            tm //= 2

    # --- zero-pad awkward shapes up to tile multiples (robustness fallback).
    if Mp != M or Kp != K:
        a = jnp.pad(a, ((0, Mp - M), (0, Kp - K)))
    if Kp != K or Np != N:
        b = jnp.pad(b, ((0, Kp - K), (0, Np - N)))

    grid = (Mp // tm, Np // tn, Kp // tk)
    gk = grid[2]

    in_specs = [
        pl.BlockSpec((tm, tk), lambda m, n, k: (m, k)),
        pl.BlockSpec((tk, tn), lambda m, n, k: (k, n)),
    ]
    out_spec = pl.BlockSpec((tm, tn), lambda m, n, k: (m, n))

    if gk == 1:
        kernel = _mm_kernel_direct
        scratch = []
    elif out_dtype == jnp.float32:
        kernel = _mm_kernel_accum_out
        scratch = []
    else:
        kernel = _mm_kernel_accum_scratch
        scratch = [pltpu.VMEM((tm, tn), jnp.float32)]

    vmem_limit = min(48 << 20, max(24 << 20, int(1.5 * footprint) + (2 << 20)))

    out = pl.pallas_call(
        kernel,
        out_shape=jax.ShapeDtypeStruct((Mp, Np), out_dtype),
        grid_spec=pltpu.PrefetchScalarGridSpec(
            num_scalar_prefetch=0,
            grid=grid,
            in_specs=in_specs,
            out_specs=out_spec,
            scratch_shapes=scratch,
        ),
        compiler_params=pltpu.CompilerParams(
            # Output tiles independent along m/n (megacore-shardable on v7x);
            # reduction axis is LAST and "arbitrary" (accumulator invariant).
            dimension_semantics=("parallel", "parallel", "arbitrary"),
            vmem_limit_bytes=vmem_limit,
        ),
        cost_estimate=pl.CostEstimate(
            flops=2 * M * N * K,
            transcendentals=0,
            bytes_accessed=M * K * a_bytes + K * N * b_bytes + M * N * o_bytes,
        ),
    )(a, b)

    if Mp != M or Np != N:
        out = out[:M, :N]
    return out


class GaussianSketchOp:
    """JAX/Pallas port of nn_ood.sketching.GaussianSketchOp (d x N Gaussian sketch)."""

    def __init__(self, d: int, N: int, key: jax.Array):
        self.d = d
        self.N = N
        # nn.Parameter(torch.randn(d, N)) -> deterministic standard-normal init here.
        self.test_matrix = jax.random.normal(key, (d, N), dtype=jnp.float32)
        # Cache S^T once (avoids a per-call XLA transpose through HBM).  No lane
        # padding: a full-dim (N, d) B block is legal, and skipping the padding
        # removes 4x output writes plus an extra HBM slice pass.
        self.test_matrix_T = self.test_matrix.T  # (N, d)

    def __call__(self, M: jax.Array, transpose: bool = False) -> jax.Array:
        if transpose:
            # M @ S^T : (K, N) @ (N, d) -> (K, d).  M is streamed along rows ->
            # big tm tiles; tn (= d) and tk (= N) are small.
            return pallas_matmul(M, self.test_matrix_T,
                                 tm_cap=2048, tn_cap=512, tk_cap=1024)
        # S @ M : (d, N) @ (N, K) -> (d, K).  M is streamed along output
        # columns -> big tn tiles; tm (= d) and tk (= N) are small.
        return pallas_matmul(self.test_matrix, M,
                             tm_cap=256, tn_cap=2048, tk_cap=1024)


if __name__ == "__main__":
    key = jax.random.PRNGKey(0)
    k_param, k_m1, k_m2, k_a, k_b = jax.random.split(key, 5)

    d, N = 32, 256        # sketch: d x N operator
    K_cols = 128          # columns of M for the non-transpose branch
    K_rows = 64           # rows of M for the transpose branch

    op = GaussianSketchOp(d, N, k_param)

    # forward(M): S @ M
    M1 = jax.random.normal(k_m1, (N, K_cols), dtype=jnp.float32)
    out1 = jax.block_until_ready(op(M1, transpose=False))
    ref1 = op.test_matrix @ M1
    assert out1.shape == (d, K_cols)
    assert jnp.allclose(out1, ref1, atol=1e-4, rtol=1e-4)

    # forward(M, transpose=True): M @ S^T  (no padding / no post-slice)
    M2 = jax.random.normal(k_m2, (K_rows, N), dtype=jnp.float32)
    out2 = jax.block_until_ready(op(M2, transpose=True))
    ref2 = M2 @ op.test_matrix.T
    assert out2.shape == (K_rows, d)
    assert jnp.allclose(out2, ref2, atol=1e-4, rtol=1e-4)

    # Larger contraction dim to exercise the multi-step accumulate-into-output path.
    A3 = jax.random.normal(k_a, (32, 2048), dtype=jnp.float32)
    B3 = jax.random.normal(k_b, (2048, 256), dtype=jnp.float32)
    out3 = jax.block_until_ready(pallas_matmul(A3, B3))
    ref3 = A3 @ B3
    assert jnp.allclose(out3, ref3, atol=1e-3, rtol=1e-3)

    # Awkward (non-divisible) shape to exercise the pad-and-slice fallback.
    A4 = jax.random.normal(k_a, (40, 300), dtype=jnp.float32)
    B4 = jax.random.normal(k_b, (300, 200), dtype=jnp.float32)
    out4 = jax.block_until_ready(pallas_matmul(A4, B4, tm_cap=32, tn_cap=128, tk_cap=128))
    ref4 = A4 @ B4
    assert out4.shape == (40, 200)
    assert jnp.allclose(out4, ref4, atol=1e-3, rtol=1e-3)

    print("KERNEL_OK")
</pallas_src>

<mosaic_0001>
module attributes {stable_mosaic.version = 11 : i64} {
  func.func @_mm_kernel_direct(%arg0: i32, %arg1: i32, %arg2: i32, %arg3: memref<16x256xf32, #tpu.memory_space<vmem>>, %arg4: memref<256x128xf32, #tpu.memory_space<vmem>>, %arg5: memref<16x128xf32, #tpu.memory_space<vmem>>) attributes {dimension_semantics = [#tpu.dimension_semantics<parallel>, #tpu.dimension_semantics<parallel>, #tpu.dimension_semantics<arbitrary>], iteration_bounds = array<i64: 2, 1, 1>, scalar_prefetch = 0 : i64, scratch_operands = 0 : i64, tpu.core_type = #tpu.core_type<tc>, window_params = [{transform_indices = @transform_0, window_bounds = array<i64: 16, 256>}, {transform_indices = @transform_1, window_bounds = array<i64: 256, 128>}, {transform_indices = @transform_2, window_bounds = array<i64: 16, 128>}]} {
    %c0 = arith.constant 0 : index
    %c0_0 = arith.constant 0 : index
    %0 = vector.load %arg3[%c0, %c0_0] : memref<16x256xf32, #tpu.memory_space<vmem>>, vector<16x256xf32>
    %c0_1 = arith.constant 0 : index
    %c0_2 = arith.constant 0 : index
    %1 = vector.load %arg4[%c0_1, %c0_2] : memref<256x128xf32, #tpu.memory_space<vmem>>, vector<256x128xf32>
    %cst = arith.constant dense<0.000000e+00> : vector<16x128xf32>
    %2 = tpu.matmul %0, %1, %cst {dimension_numbers = #tpu.dot_dimension_numbers<[1], [0], [0], [1], [0, 0, 1, 1], [], []>} : vector<16x256xf32>, vector<256x128xf32>, vector<16x128xf32> -> vector<16x128xf32>
    %c0_3 = arith.constant 0 : index
    %c0_4 = arith.constant 0 : index
    %3 = vector.load %arg5[%c0_3, %c0_4] : memref<16x128xf32, #tpu.memory_space<vmem>>, vector<16x128xf32>
    tpu.vector_store %arg5[%c0_3, %c0_4], %2 {strides = array<i32>} : memref<16x128xf32, #tpu.memory_space<vmem>>, vector<16x128xf32>,
    return
  }
  func.func @transform_0(%arg0: i32, %arg1: i32, %arg2: i32) -> (i32, i32) {
    %c0_i32 = arith.constant 0 : i32
    return %arg0, %arg2 : i32, i32
  }
  func.func @transform_1(%arg0: i32, %arg1: i32, %arg2: i32) -> (i32, i32) {
    %c0_i32 = arith.constant 0 : i32
    return %arg2, %arg1 : i32, i32
  }
  func.func @transform_2(%arg0: i32, %arg1: i32, %arg2: i32) -> (i32, i32) {
    %c0_i32 = arith.constant 0 : i32
    return %arg0, %arg1 : i32, i32
  }
}

</mosaic_0001>

<llo_original>
// kernel: tpu_custom_call.1
$region0: #{tpu_custom_call.1}
  #allocation0 [shape = 'u32[]', space=smem, size = 0x4, offset = 0x4, fixed_abs, tag = 'smem constant byte address 0x4 - core index']
  #allocation1 [shape = 'u32[144,128]{1,0:T(1,128)}', space=vmem, size = 0x12000, scoped, tag = 'internal scratch']
  %s0 = inlined_call_operand.hbm [shape: f32[32,256], index: 0, kind: input, shape index: {}]
  %s1 = inlined_call_operand.hbm [shape: f32[256,128], index: 1, kind: input, shape index: {}]
  %s2 = inlined_call_operand.hbm [shape: f32[32,128], index: 2, kind: output, shape index: {}]
  %s3 = sld [smem:[#allocation0]]
  $region49: #{tpu_custom_call.1} parent=0
    _
  %s5 = ssub.s32 1, %s3
  %s6 = scalar_select 0, %s5, %s3
  $region1: #{tpu_custom_call.1} parent=0
    #allocation2 [shape = 'u8[32768]{0}', space=vmem, size = 0x8000, scoped, tag = 'input window, operand 0']
    #allocation3 [shape = 's32[2]{0}', space=sflag, size = 0x8, scoped, tag = 'scoped memory for tpu_custom_call.1']
    #allocation4 [shape = 's32[2]{0}', space=sflag, size = 0x8, scoped, tag = 'scoped memory for tpu_custom_call.1']
    #allocation5 [shape = 'u8[131072]{0}', space=vmem, size = 0x20000, scoped, tag = 'input window, operand 1, single buffered']
    #allocation6 [shape = 's32[1]{0}', space=sflag, size = 0x4, scoped, tag = 'scoped memory for tpu_custom_call.1']
    #allocation7 [shape = 'u8[16384]{0}', space=vmem, size = 0x4000, scoped, tag = 'output window, operand 0']
    %7 = vsyncpa [#allocation3], 0
    %s8 = scalar_lea.sflag [#allocation3], 1
    %9 = vsyncpa %s8, 0
    %10 = vsyncpa [#allocation6], 0
    %11 = vsyncpa [#allocation4], 0
    %s12 = scalar_lea.sflag [#allocation4], 1
    %13 = vsyncpa %s12, 0
    loop: start=0, step=1, limit=4
    $region2: #{tpu_custom_call.1} parent=1 // loop_pre_header
      _
    $region3: #{tpu_custom_call.1} parent=1 // loop_header
      %s15 = sphi 0, %s19
      %p16 = scmp.ge.s32.totalorder %s15, 4
      %s22 = sphi 0, %s41
      %s23 = sphi 0, %s37
      %s24 = sphi 0, %s33
      %s25 = sphi 0, %s22
      %s26 = sphi 0, %s23
      %s27 = sphi 0, %s24
      %s28 = sphi 0, %s25
      %s29 = sphi 0, %s26
      %s30 = sphi 0, %s27
      %s46 = sphi 0, %s48
      %s49 = sphi 0, %s46
      %s50 = sphi 0, %s49
      %s66 = sphi 0, %s50
      %s74 = sphi 0, %s76
      %s77 = sphi 0, %s74
      %s78 = sphi 0, %s77
      %s94 = sphi 0, %s78
      %s102 = sphi 0, %s104
      %s105 = sphi 0, %s102
      %s106 = sphi 0, %s105
      %s122 = sphi 0, %s106
    $region4: #{tpu_custom_call.1} parent=1 // loop_header_branch
      %18 = sbr.rel (%p16) target = $region8
    $region5: #{tpu_custom_call.1} parent=1 // loop_body
      %s20 = ssub.s32 %s15, 1
      %s21 = ssub.s32 %s15, 2
      %s31 = sadd.s32 1, %s24
      %p32 = scmp.ge.s32.totalorder %s31, 1
      %s33 = scalar_select %p32, 0, %s31
      %s34 = sadd.s32 1, %s23
      %s35 = scalar_select %p32, %s34, %s23
      %p36 = scmp.ge.s32.totalorder %s35, 1
      %s37 = scalar_select %p36, 0, %s35
      %s38 = sadd.s32 1, %s22
      %s39 = scalar_select %p36, %s38, %s22
      %p40 = scmp.ge.s32.totalorder %s39, 2
      %s41 = scalar_select %p40, 0, %s39
      %s42 = ssub.s32 %s22, %s41
      %s43 = ssub.s32 %s24, %s33
      %s44 = sor.u32 %s42, %s43
      %p45 = scmp.eq.s32.totalorder %s44, 0
      %s47 = sadd.s32 %s46, 1
      %s48 = scalar_select %p45, %s46, %s47
      %p51 = pneg %p45
      %p52 = scmp.eq.s32.totalorder %s15, 1
      %p53 = por %p51, %p52
      %p54 = scmp.ne.s32.totalorder %s46, %s49
      %p55 = scmp.eq.s32.totalorder %s15, 0
      %p56 = por %p54, %p55
      %p57 = scmp.ne.s32.totalorder %s46, %s49
      %p58 = scmp.eq.s32.totalorder %s20, 1
      %p59 = por %p57, %p58
      %p60 = scmp.ne.s32.totalorder %s49, %s50
      %p61 = scmp.eq.s32.totalorder %s20, 0
      %p62 = por %p60, %p61
      %p63 = scmp.ne.s32.totalorder %s49, %s50
      %p64 = scmp.eq.s32.totalorder %s21, 1
      %p65 = por %p63, %p64
      %p67 = scmp.ne.s32.totalorder %s50, %s66
      %p68 = scmp.eq.s32.totalorder %s21, 0
      %p69 = por %p67, %p68
      %s70 = ssub.s32 %s24, %s33
      %s71 = ssub.s32 %s23, %s37
      %s72 = sor.u32 %s70, %s71
      %p73 = scmp.eq.s32.totalorder %s72, 0
      %s75 = sadd.s32 %s74, 1
      %s76 = scalar_select %p73, %s74, %s75
      %p79 = pneg %p73
      %p80 = scmp.eq.s32.totalorder %s15, 1
      %p81 = por %p79, %p80
      %p82 = scmp.ne.s32.totalorder %s74, %s77
      %p83 = scmp.eq.s32.totalorder %s15, 0
      %p84 = por %p82, %p83
      %p85 = scmp.ne.s32.totalorder %s74, %s77
      %p86 = scmp.eq.s32.totalorder %s20, 1
      %p87 = por %p85, %p86
      %p88 = scmp.ne.s32.totalorder %s77, %s78
      %p89 = scmp.eq.s32.totalorder %s20, 0
      %p90 = por %p88, %p89
      %p91 = scmp.ne.s32.totalorder %s77, %s78
      %p92 = scmp.eq.s32.totalorder %s21, 1
      %p93 = por %p91, %p92
      %p95 = scmp.ne.s32.totalorder %s78, %s94
      %p96 = scmp.eq.s32.totalorder %s21, 0
      %p97 = por %p95, %p96
      %s98 = ssub.s32 %s22, %s41
      %s99 = ssub.s32 %s23, %s37
      %s100 = sor.u32 %s98, %s99
      %p101 = scmp.eq.s32.totalorder %s100, 0
      %s103 = sadd.s32 %s102, 1
      %s104 = scalar_select %p101, %s102, %s103
      %p107 = pneg %p101
      %p108 = scmp.eq.s32.totalorder %s15, 1
      %p109 = por %p107, %p108
      %p110 = scmp.ne.s32.totalorder %s102, %s105
      %p111 = scmp.eq.s32.totalorder %s15, 0
      %p112 = por %p110, %p111
      %p113 = scmp.ne.s32.totalorder %s102, %s105
      %p114 = scmp.eq.s32.totalorder %s20, 1
      %p115 = por %p113, %p114
      %p116 = scmp.ne.s32.totalorder %s105, %s106
      %p117 = scmp.eq.s32.totalorder %s20, 0
      %p118 = por %p116, %p117
      %p119 = scmp.ne.s32.totalorder %s105, %s106
      %p120 = scmp.eq.s32.totalorder %s21, 1
      %p121 = por %p119, %p120
      %p123 = scmp.ne.s32.totalorder %s106, %s122
      %p124 = scmp.eq.s32.totalorder %s21, 0
      %p125 = por %p123, %p124
      %p126 = scmp.le.s32.totalorder 1, %s15
      %p127 = scmp.lt.s32.totalorder %s15, 3
      %p128 = pnand %p126, %p127
      %p129 = pneg %p128
      // Predicated region
      $region9: #{tpu_custom_call.1} parent=5 // pred_check
        _
      $region10: #{tpu_custom_call.1} parent=5 // pred_check_branch
        %131 = sbr.rel (%p128) target = $region12
      $region11: #{tpu_custom_call.1} parent=5 // pred_region
        %s132 = ssub.s32 %s15, 1
        // Predicated region
        $region13: #{tpu_custom_call.1} parent=11 // pred_check
          %p133 = pneg %p90
        $region14: #{tpu_custom_call.1} parent=11 // pred_check_branch
          %135 = sbr.rel (%p133) target = $region16
        $region15: #{tpu_custom_call.1} parent=11 // pred_region
          %s136 = smul.u32 32, %s27
          %s138 = ssub.s32 4096, 4096
          %139 = vsyncadd [#allocation6], %s138
          %s140 = sadd.s32 %s26, %s136
          %s141 = smul.addr %s140, 128
          %s142 = scalar_lea.hbm %s1, %s141
          %s143 = sshll.u32 [#allocation5], 4
          %s144 = int_to_ptr.vmem [resolvable:$true] %s143
          %149 = dma.hbm_to_vmem [thread:$0]  %s142, 4096, %s144, [#allocation6], 128, 128, 8
        $region16: #{tpu_custom_call.1} parent=11 // pred_fallthru
          _
      $region12: #{tpu_custom_call.1} parent=5 // pred_fallthru
        _
      %p150 = scmp.lt.s32.totalorder %s15, 2
      // Predicated region
      $region17: #{tpu_custom_call.1} parent=5 // pred_check
        %p151 = pneg %p150
      $region18: #{tpu_custom_call.1} parent=5 // pred_check_branch
        %153 = sbr.rel (%p151) target = $region20
      $region19: #{tpu_custom_call.1} parent=5 // pred_region
        // Predicated region
        $region21: #{tpu_custom_call.1} parent=19 // pred_check
          %p154 = pneg %p56
        $region22: #{tpu_custom_call.1} parent=19 // pred_check_branch
          %156 = sbr.rel (%p154) target = $region24
        $region23: #{tpu_custom_call.1} parent=19 // pred_region
          %s157 = sand.u32 %s46, 1
          %s158 = scalar_lea.sflag [#allocation3], %s157
          %s159 = sand.u32 %s46, 1
          %s160 = smul.addr %s159, 32
          %s161 = scalar_lea.vmem [#allocation2], %s160
          %s162 = smul.u32 2, %s22
          %s163 = smul.u32 2, %s24
          %s165 = ssub.s32 512, 512
          %166 = vsyncadd %s158, %s165
          %s167 = smul.addr %s162, 2
          %s168 = sadd.s32 %s163, %s167
          %s169 = smul.addr %s168, 128
          %s170 = scalar_lea.hbm %s0, %s169
          %s171 = sshll.u32 %s161, 4
          %s172 = int_to_ptr.vmem [resolvable:$true] %s171
          %177 = dma.hbm_to_vmem [thread:$0]  %s170, 512, %s172, %s158, 256, 256, 16
        $region24: #{tpu_custom_call.1} parent=19 // pred_fallthru
          _
      $region20: #{tpu_custom_call.1} parent=5 // pred_fallthru
        _
      %p178 = scmp.le.s32.totalorder 1, %s15
      %p179 = scmp.lt.s32.totalorder %s15, 3
      %p180 = pnand %p178, %p179
      %p181 = pneg %p180
      // Predicated region
      $region25: #{tpu_custom_call.1} parent=5 // pred_check
        _
      $region26: #{tpu_custom_call.1} parent=5 // pred_check_branch
        %183 = sbr.rel (%p180) target = $region28
      $region27: #{tpu_custom_call.1} parent=5 // pred_region
        %s184 = ssub.s32 %s15, 1
        %s185 = sand.u32 %s49, 1
        %s186 = scalar_lea.sflag [#allocation3], %s185
        %s187 = sand.u32 %s49, 1
        %s188 = smul.addr %s187, 32
        %s189 = scalar_lea.vmem [#allocation2], %s188
        // Predicated region
        $region29: #{tpu_custom_call.1} parent=27 // pred_check
          %p190 = pneg %p62
        $region30: #{tpu_custom_call.1} parent=27 // pred_check_branch
          %192 = sbr.rel (%p190) target = $region32
        $region31: #{tpu_custom_call.1} parent=27 // pred_region
          %193 = dma.done %s186, 512
        $region32: #{tpu_custom_call.1} parent=27 // pred_fallthru
          _
        // Predicated region
        $region33: #{tpu_custom_call.1} parent=27 // pred_check
          %p194 = pneg %p90
        $region34: #{tpu_custom_call.1} parent=27 // pred_check_branch
          %196 = sbr.rel (%p194) target = $region36
        $region35: #{tpu_custom_call.1} parent=27 // pred_region
          %197 = dma.done [#allocation6], 4096
        $region36: #{tpu_custom_call.1} parent=27 // pred_fallthru
          _
        %s198 = sand.u32 %s49, 1
        %s199 = scalar_lea.sflag [#allocation3], %s198
        %s200 = sand.u32 %s49, 1
        %s201 = smul.addr %s200, 32
        %s202 = scalar_lea.vmem [#allocation2], %s201
        %p203 = pneg %p62
        %p204 = pneg %p59
        %p205 = pneg %p90
        %p206 = pneg %p87
        %p207 = pneg %p118
        %p208 = pneg %p115
        %s209 = sand.u32 %s105, 1
        %s210 = scalar_lea.sflag [#allocation4], %s209
        %s211 = sand.u32 %s105, 1
        %s212 = smul.addr %s211, 16
        %s213 = scalar_lea.vmem [#allocation7], %s212
        %s214 = smul.u32 2, %s25
        %s215 = smul.u32 2, %s27
        %s216 = smul.u32 32, %s27
        %s217 = smul.u32 2, %s25
        %v218 = vld [vmem:[%s189] sm:$0xff]
        %v219 = vld [vmem:[%s189 + $0x8] sm:$0xff]
        %v220 = vld [vmem:[%s189 + $0x10] sm:$0xff]
        %v221 = vld [vmem:[%s189 + $0x18] sm:$0xff]
        %v222 = vld [vmem:[#allocation5] sm:$0xff]
        %v223 = vld [vmem:[#allocation5 + $0x8] sm:$0xff]
        %v224 = vld [vmem:[#allocation5 + $0x10] sm:$0xff]
        %v225 = vld [vmem:[#allocation5 + $0x18] sm:$0xff]
        %v226 = vld [vmem:[#allocation5 + $0x20] sm:$0xff]
        %v227 = vld [vmem:[#allocation5 + $0x28] sm:$0xff]
        %v228 = vld [vmem:[#allocation5 + $0x30] sm:$0xff]
        %v229 = vld [vmem:[#allocation5 + $0x38] sm:$0xff]
        %v230 = vld [vmem:[#allocation5 + $0x40] sm:$0xff]
        %v231 = vld [vmem:[#allocation5 + $0x48] sm:$0xff]
        %v232 = vld [vmem:[#allocation5 + $0x50] sm:$0xff]
        %v233 = vld [vmem:[#allocation5 + $0x58] sm:$0xff]
        %v234 = vld [vmem:[#allocation5 + $0x60] sm:$0xff]
        %v235 = vld [vmem:[#allocation5 + $0x68] sm:$0xff]
        %v236 = vld [vmem:[#allocation5 + $0x70] sm:$0xff]
        %v237 = vld [vmem:[#allocation5 + $0x78] sm:$0xff]
        %v238 = vld [vmem:[#allocation5 + $0x80] sm:$0xff]
        %v239 = vld [vmem:[#allocation5 + $0x88] sm:$0xff]
        %v240 = vld [vmem:[#allocation5 + $0x90] sm:$0xff]
        %v241 = vld [vmem:[#allocation5 + $0x98] sm:$0xff]
        %v242 = vld [vmem:[#allocation5 + $0xa0] sm:$0xff]
        %v243 = vld [vmem:[#allocation5 + $0xa8] sm:$0xff]
        %v244 = vld [vmem:[#allocation5 + $0xb0] sm:$0xff]
        %v245 = vld [vmem:[#allocation5 + $0xb8] sm:$0xff]
        %v246 = vld [vmem:[#allocation5 + $0xc0] sm:$0xff]
        %v247 = vld [vmem:[#allocation5 + $0xc8] sm:$0xff]
        %v248 = vld [vmem:[#allocation5 + $0xd0] sm:$0xff]
        %v249 = vld [vmem:[#allocation5 + $0xd8] sm:$0xff]
        %v250 = vld [vmem:[#allocation5 + $0xe0] sm:$0xff]
        %v251 = vld [vmem:[#allocation5 + $0xe8] sm:$0xff]
        %v252 = vld [vmem:[#allocation5 + $0xf0] sm:$0xff]
        %v253 = vld [vmem:[#allocation5 + $0xf8] sm:$0xff]
        %254 = vmatprep.subr.mxu0 0.0
        %255 = vmatpush1.msra.mxu0 %v222
        %256 = vmatprep.subr.mxu0 0.0
        %257 = vmatpush1.msra.mxu0 %v223
        %258 = vmatprep.subr.mxu0 0.0
        %259 = vmatpush1.msra.mxu0 %v224
        %260 = vmatprep.subr.mxu0 0.0
        %261 = vmatpush1.msra.mxu0 %v225
        %262 = vmatprep.subr.mxu0 0.0
        %263 = vmatpush1.msra.mxu0 %v226
        %264 = vmatprep.subr.mxu0 0.0
        %265 = vmatpush1.msra.mxu0 %v227
        %266 = vmatprep.subr.mxu0 0.0
        %267 = vmatpush1.msra.mxu0 %v228
        %268 = vmatprep.subr.mxu0 0.0
        %269 = vmatpush1.msra.mxu0 %v229
        %270 = vmatprep.subr.mxu0 0.0
        %271 = vmatpush1.msra.mxu0 %v230
        %272 = vmatprep.subr.mxu0 0.0
        %273 = vmatpush1.msra.mxu0 %v231
        %274 = vmatprep.subr.mxu0 0.0
        %275 = vmatpush1.msra.mxu0 %v232
        %276 = vmatprep.subr.mxu0 0.0
        %277 = vmatpush1.msra.mxu0 %v233
        %278 = vmatprep.subr.mxu0 0.0
        %279 = vmatpush1.msra.mxu0 %v234
        %280 = vmatprep.subr.mxu0 0.0
        %281 = vmatpush1.msra.mxu0 %v235
        %282 = vmatprep.subr.mxu0 0.0
        %283 = vmatpush1.msra.mxu0 %v236
        %284 = vmatprep.subr.mxu0 0.0
        %285 = vmatpush1.msra.mxu0 %v237
        %286 = vmatprep.subr.mxu0 0.0
        %287 = vmatpush1.msra.mxu0 %v238
        %288 = vmatprep.subr.mxu0 0.0
        %289 = vmatpush1.msra.mxu0 %v239
        %290 = vmatprep.subr.mxu0 0.0
        %291 = vmatpush1.msra.mxu0 %v240
        %292 = vmatprep.subr.mxu0 0.0
        %293 = vmatpush1.msra.mxu0 %v241
        %294 = vmatprep.subr.mxu0 0.0
        %295 = vmatpush1.msra.mxu0 %v242
        %296 = vmatprep.subr.mxu0 0.0
        %297 = vmatpush1.msra.mxu0 %v243
        %298 = vmatprep.subr.mxu0 0.0
        %299 = vmatpush1.msra.mxu0 %v244
        %300 = vmatprep.subr.mxu0 0.0
        %301 = vmatpush1.msra.mxu0 %v245
        %302 = vmatprep.subr.mxu0 0.0
        %303 = vmatpush1.msra.mxu0 %v246
        %304 = vmatprep.subr.mxu0 0.0
        %305 = vmatpush1.msra.mxu0 %v247
        %306 = vmatprep.subr.mxu0 0.0
        %307 = vmatpush1.msra.mxu0 %v248
        %308 = vmatprep.subr.mxu0 0.0
        %309 = vmatpush1.msra.mxu0 %v249
        %310 = vmatprep.subr.mxu0 0.0
        %311 = vmatpush1.msra.mxu0 %v250
        %312 = vmatprep.subr.mxu0 0.0
        %313 = vmatpush1.msra.mxu0 %v251
        %314 = vmatprep.subr.mxu0 0.0
        %315 = vmatpush1.msra.mxu0 %v252
        %316 = vmatprep.subr.mxu0 0.0
        %317 = vmatpush1.msra.mxu0 %v253
        %318 = vmatprep.mubr.f32.mxu0 %v219
        %319 = vmatmul.mubr.f32.gmra.mrb[0].mxu0 %v218
        %v320 = vpop.f32.mrb[0].mxu0
        %v321 = vadd.f32 0.0, %v320
        %v322 = vpop.f32.mrb[0].mxu0
        %323 = vmatprep.mubr.f32.mxu0 %v221
        %324 = vmatmul.mubr.f32.gmra.mrb[0].mxu0 %v220
        %v325 = vpop.f32.mrb[0].mxu0
        %v326 = vadd.f32 0.0, %v325
        %v327 = vpop.f32.mrb[0].mxu0
        %328 = vdwg.mxu0
        %329 = vst [vmem:[%s213] sm:$0xff] %v321
        %330 = vst [vmem:[%s213 + $0x8] sm:$0xff] %v326
        %s331 = sand.u32 %s105, 1
        %s332 = scalar_lea.sflag [#allocation4], %s331
        %s333 = sand.u32 %s105, 1
        %s334 = smul.addr %s333, 16
        %s335 = scalar_lea.vmem [#allocation7], %s334
        // Predicated region
        $region37: #{tpu_custom_call.1} parent=27 // pred_check
          %p336 = pneg %p115
        $region38: #{tpu_custom_call.1} parent=27 // pred_check_branch
          %338 = sbr.rel (%p336) target = $region40
        $region39: #{tpu_custom_call.1} parent=27 // pred_region
          %s339 = smul.u32 2, %s25
          %s341 = ssub.s32 256, 256
          %342 = vsyncadd %s332, %s341
          %s343 = sadd.s32 %s26, %s339
          %s344 = smul.addr %s343, 128
          %s345 = scalar_lea.hbm %s2, %s344
          %s346 = sshll.u32 %s335, 4
          %s347 = int_to_ptr.vmem [resolvable:$true] %s346
          %352 = dma.vmem_to_hbm [thread:$0]  %s347, 256, %s345, %s332, 128, 128, 8
        $region40: #{tpu_custom_call.1} parent=27 // pred_fallthru
          _
      $region28: #{tpu_custom_call.1} parent=5 // pred_fallthru
        _
      %p353 = scmp.le.s32.totalorder 2, %s15
      // Predicated region
      $region41: #{tpu_custom_call.1} parent=5 // pred_check
        %p354 = pneg %p353
      $region42: #{tpu_custom_call.1} parent=5 // pred_check_branch
        %356 = sbr.rel (%p354) target = $region44
      $region43: #{tpu_custom_call.1} parent=5 // pred_region
        %s357 = ssub.s32 %s15, 2
        // Predicated region
        $region45: #{tpu_custom_call.1} parent=43 // pred_check
          %p358 = pneg %p121
        $region46: #{tpu_custom_call.1} parent=43 // pred_check_branch
          %360 = sbr.rel (%p358) target = $region48
        $region47: #{tpu_custom_call.1} parent=43 // pred_region
          %s361 = sand.u32 %s106, 1
          %s362 = scalar_lea.sflag [#allocation4], %s361
          %s363 = sand.u32 %s106, 1
          %s364 = smul.addr %s363, 16
          %s365 = scalar_lea.vmem [#allocation7], %s364
          %366 = dma.done %s362, 256
        $region48: #{tpu_custom_call.1} parent=43 // pred_fallthru
          _
      $region44: #{tpu_custom_call.1} parent=5 // pred_fallthru
        _
    $region6: #{tpu_custom_call.1} parent=1 // loop_footer
      %s19 = sadd.s32 1, %s15
    $region7: #{tpu_custom_call.1} parent=1 // loop_footer_branch
      %14 = sbr.rel target = $region3
    $region8: #{tpu_custom_call.1} parent=1 // loop_exit
      _
    %367 = vsyncpa [#allocation3], 1
    %s368 = scalar_lea.sflag [#allocation3], 1
    %369 = vsyncpa %s368, 1
    %370 = vsyncpa [#allocation6], 1
    %371 = vsyncpa [#allocation4], 1
    %s372 = scalar_lea.sflag [#allocation4], 1
    %373 = vsyncpa %s372, 1

</llo_original>
